<compile_context>
chip_gen: v5e
topology: v5e:2x2
jax: 0.10.0
libtpu: 0.0.40
codegen_flags: <defaults>
</compile_context>

<pallas_src>
import functools
import math

import jax
import jax.numpy as jnp
from jax import lax
from jax.experimental import pallas as pl
from jax.experimental.pallas import tpu as pltpu


def _round_up(x, m):
    return (x + m - 1) // m * m


def _nt_xent_denom_kernel(row_ref, col_ref, out_ref, denom_acc, *, inv_t: float):
    """One (row-tile, col-tile) step: accumulate sum_j exp(sim_ij / t), j != i.

    row_ref:   (TR, D) tile of pre-normalized reps (rows whose denominator we build)
    col_ref:   (TC, D) tile of pre-normalized reps (columns of the similarity matrix)
    out_ref:   (TR, 1) per-row denominator (written on the last col-tile)
    denom_acc: (TR, 1) f32 VMEM running denominator
    """
    ri = pl.program_id(0)
    ci = pl.program_id(1)
    tr = row_ref.shape[0]
    tc = col_ref.shape[0]

    @pl.when(ci == 0)
    def _init():
        denom_acc[...] = jnp.zeros_like(denom_acc)

    # (TR, TC) block of the similarity matrix on the MXU; bf16 inputs by default,
    # f32 accumulation.
    s = lax.dot_general(
        row_ref[...], col_ref[...],
        dimension_numbers=(((1,), (1,)), ((), ())),
        preferred_element_type=jnp.float32,
    )

    # exp(sim / temperature); the single VPU multiply hides under the EUP exp.
    e = jnp.exp(s * jnp.float32(inv_t))
    denom_acc[...] += jnp.sum(e, axis=1, keepdims=True)

    # Remove the self-similarity terms exactly; only tiles intersecting the
    # diagonal pay for the iota/compare/select, all other steps skip it at runtime.
    r0 = ri * tr
    c0 = ci * tc

    @pl.when(jnp.logical_and(r0 < c0 + tc, c0 < r0 + tr))
    def _subtract_diag():
        row_g = r0 + lax.broadcasted_iota(jnp.int32, (tr, tc), 0)
        col_g = c0 + lax.broadcasted_iota(jnp.int32, (tr, tc), 1)
        denom_acc[...] -= jnp.sum(
            jnp.where(row_g == col_g, e, jnp.float32(0.0)),
            axis=1, keepdims=True)

    @pl.when(ci == pl.num_programs(1) - 1)
    def _finalize():
        out_ref[...] = denom_acc[...]


def contrastive_loss(proj_1, proj_2, temperature: float = 0.5, *,
                     block_rows: int = None, block_cols: int = None,
                     matmul_dtype=jnp.bfloat16):
    """Pallas NT-Xent (SimCLR) loss. proj_1, proj_2: [B, D] -> scalar f32 loss.

    block_rows / block_cols: override the tile heuristic (e.g. block_rows=512 on
    v5e for moderate D to cut col-tile re-streaming; 128 on v7x for very large D).
    """
    B, D = proj_1.shape
    assert proj_2.shape == (B, D)
    if temperature < 1.0 / 80.0:
        raise ValueError("temperature too small: exp(sim/temperature) would overflow f32")
    inv_t = 1.0 / float(temperature)

    itemsize = jnp.dtype(matmul_dtype).itemsize
    sub = 16 if itemsize < 4 else 8          # sublane granularity of the input tiles

    # Estimated VMEM footprint for a given square-ish tile size (double-buffered
    # inputs + f32/int32 tile temporaries + output/scratch).
    def _footprint(br, bc):
        return (2 * (br + bc) * D * itemsize     # 2 input streams, double buffered
                + 8 * br * bc * 4                # s/e tiles, iotas, reduce temps
                + 4 * br * 4)                    # output buffers + scratch

    # ---- tile heuristic: MXU/lane-dense, VMEM-aware (v7x: 64 MiB), >=2 row blocks ----
    if block_rows is None or block_cols is None:
        max_blk = 256 if D <= 2048 else 128
        blk = min(max_blk, _round_up(B, sub))
        while _footprint(blk, blk) > (40 << 20) and blk > 2 * sub:
            blk = max(sub, _round_up(blk // 2, sub))
        if block_rows is None:
            block_rows = blk
        if block_cols is None:
            block_cols = blk
    assert block_rows % sub == 0 and block_cols % sub == 0, \
        "block sizes must be multiples of the sublane granularity (16 for bf16, 8 for f32)"

    # ---- padding: smallest granularity so both block sizes divide 2 * b_pad ----
    lcm_blk = math.lcm(block_rows, block_cols)
    gpad = lcm_blk // 2 if lcm_blk % 2 == 0 else lcm_blk
    b_pad = _round_up(B, gpad)
    n_pad = 2 * b_pad
    row_blocks = n_pad // block_rows
    col_blocks = n_pad // block_cols

    # ---- wrapper-side O(B*D) work: normalize once, positives once ----
    p1 = proj_1.astype(jnp.float32)
    p2 = proj_2.astype(jnp.float32)

    def _normalize(x):  # F.normalize(p=2, dim=1, eps=1e-12)
        n = jnp.sqrt(jnp.sum(x * x, axis=1, keepdims=True))
        return x / jnp.maximum(n, jnp.float32(1e-12))

    z_i = _normalize(p1)
    z_j = _normalize(p2)
    pos = jnp.sum(z_i * z_j, axis=1)                       # (B,) positive cosine sims, f32

    pad_rows = b_pad - B

    def _pad(z):
        return jnp.pad(z, ((0, pad_rows), (0, 0))) if pad_rows else z

    # Single HBM concat; cast once to the MXU dtype (bf16 by default).
    reps = jnp.concatenate([_pad(z_i), _pad(z_j)], axis=0).astype(matmul_dtype)  # [n_pad, D]

    kernel = functools.partial(_nt_xent_denom_kernel, inv_t=inv_t)

    vmem_limit = max(_footprint(block_rows, block_cols) + (4 << 20), 32 << 20)

    per_row_denom = pl.pallas_call(
        kernel,
        out_shape=jax.ShapeDtypeStruct((n_pad, 1), jnp.float32),
        grid_spec=pltpu.PrefetchScalarGridSpec(
            num_scalar_prefetch=0,
            grid=(row_blocks, col_blocks),
            in_specs=[
                pl.BlockSpec((block_rows, D), lambda ri, ci: (ri, 0)),
                pl.BlockSpec((block_cols, D), lambda ri, ci: (ci, 0)),
            ],
            out_specs=pl.BlockSpec((block_rows, 1), lambda ri, ci: (ri, 0)),
            scratch_shapes=[pltpu.VMEM((block_rows, 1), jnp.float32)],
        ),
        compiler_params=pltpu.CompilerParams(
            dimension_semantics=("parallel", "arbitrary"),
            vmem_limit_bytes=int(vmem_limit)),
    )(reps, reps)

    # Gather the real rows (first B of each half) and remove the contribution of
    # zero-padded columns: each contributes exp(0 / t) = 1 exactly.
    denom_all = per_row_denom[:, 0]
    denom = jnp.concatenate([denom_all[:B], denom_all[b_pad:b_pad + B]])
    denom = denom - jnp.float32(n_pad - 2 * B)

    positives = jnp.concatenate([pos, pos])                # (2B,)
    losses = -(positives * jnp.float32(inv_t) - jnp.log(denom))
    return jnp.sum(losses) / jnp.float32(2 * B)


def _reference_loss(proj_1, proj_2, temperature=0.5):
    """Plain-JAX reference mirroring the PyTorch forward."""
    B = proj_1.shape[0]
    z_i = proj_1 / jnp.maximum(jnp.linalg.norm(proj_1, axis=1, keepdims=True), 1e-12)
    z_j = proj_2 / jnp.maximum(jnp.linalg.norm(proj_2, axis=1, keepdims=True), 1e-12)
    reps = jnp.concatenate([z_i, z_j], axis=0)
    sim = reps @ reps.T
    sim_ij = jnp.diagonal(sim, offset=B)
    sim_ji = jnp.diagonal(sim, offset=-B)
    positives = jnp.concatenate([sim_ij, sim_ji], axis=0)
    nominator = jnp.exp(positives / temperature)
    mask = (~jnp.eye(2 * B, dtype=bool)).astype(jnp.float32)
    denominator = jnp.sum(mask * jnp.exp(sim / temperature), axis=1)
    all_losses = -jnp.log(nominator / denominator)
    return jnp.sum(all_losses) / (2 * B)


if __name__ == "__main__":
    key = jax.random.PRNGKey(0)
    k1, k2, k3, k4 = jax.random.split(key, 4)

    # Small [batch, embedding_dim] projections, as implied by the module.
    batch, dim = 8, 32
    proj_1 = jax.random.normal(k1, (batch, dim), dtype=jnp.float32)
    proj_2 = jax.random.normal(k2, (batch, dim), dtype=jnp.float32)
    ref = _reference_loss(proj_1, proj_2, temperature=0.5)

    # Exact path: f32 MXU matmul (tight tolerance vs reference).
    loss_f32 = jax.block_until_ready(
        contrastive_loss(proj_1, proj_2, temperature=0.5, matmul_dtype=jnp.float32))
    assert jnp.allclose(loss_f32, ref, rtol=1e-5, atol=1e-5), (loss_f32, ref)

    # Default fast path: bf16 MXU matmul with f32 accumulation / exp.
    loss_bf16 = jax.block_until_ready(contrastive_loss(proj_1, proj_2, temperature=0.5))
    assert jnp.allclose(loss_bf16, ref, rtol=5e-2, atol=5e-2), (loss_bf16, ref)

    # Multi-tile grid: explicit small tiles, batch not a multiple of the tile
    # (exercises the diagonal-gated subtraction + zero-padded-column correction).
    batch2 = 20
    p1 = jax.random.normal(k3, (batch2, dim), dtype=jnp.float32)
    p2 = jax.random.normal(k4, (batch2, dim), dtype=jnp.float32)
    ref2 = _reference_loss(p1, p2, temperature=0.5)
    loss2 = jax.block_until_ready(
        contrastive_loss(p1, p2, temperature=0.5, block_rows=16, block_cols=16,
                         matmul_dtype=jnp.float32))
    assert jnp.allclose(loss2, ref2, rtol=1e-5, atol=1e-5), (loss2, ref2)

    # bf16 inputs end-to-end (DMA'd as bf16, default bf16 matmul).
    loss3 = jax.block_until_ready(
        contrastive_loss(proj_1.astype(jnp.bfloat16), proj_2.astype(jnp.bfloat16),
                         temperature=0.5))
    assert jnp.allclose(loss3, ref, rtol=0.1, atol=0.1), (loss3, ref)

    print("KERNEL_OK")
</pallas_src>

<mosaic_0001>
module attributes {stable_mosaic.version = 11 : i64} {
  func.func @_nt_xent_denom_kernel(%arg0: i32, %arg1: i32, %arg2: memref<8x32xf32, #tpu.memory_space<vmem>>, %arg3: memref<8x32xf32, #tpu.memory_space<vmem>>, %arg4: memref<8x1xf32, #tpu.memory_space<vmem>>, %arg5: memref<8x1xf32, #tpu.memory_space<vmem>>) attributes {dimension_semantics = [#tpu.dimension_semantics<parallel>, #tpu.dimension_semantics<arbitrary>], iteration_bounds = array<i64: 2, 2>, scalar_prefetch = 0 : i64, scratch_operands = 1 : i64, tpu.core_type = #tpu.core_type<tc>, window_params = [{transform_indices = @transform_0, window_bounds = array<i64: 8, 32>}, {transform_indices = @transform_1, window_bounds = array<i64: 8, 32>}, {transform_indices = @transform_2, window_bounds = array<i64: 8, 1>}]} {
    %c0_i32 = arith.constant 0 : i32
    %0 = arith.cmpi eq, %arg1, %c0_i32 : i32
    %1 = arith.extui %0 : i1 to i32
    %c0_i32_0 = arith.constant 0 : i32
    %2 = arith.cmpi ne, %1, %c0_i32_0 : i32
    scf.if %2 {
      %cst_15 = arith.constant 0.000000e+00 : f32
      %26 = vector.broadcast %cst_15 : f32 to vector<8x1xf32>
      %c0_16 = arith.constant 0 : index
      %c0_17 = arith.constant 0 : index
      %27 = vector.load %arg5[%c0_16, %c0_17] : memref<8x1xf32, #tpu.memory_space<vmem>>, vector<8x1xf32>
      tpu.vector_store %arg5[%c0_16, %c0_17], %26 {strides = array<i32>} : memref<8x1xf32, #tpu.memory_space<vmem>>, vector<8x1xf32>,
    } else {
    }
    %c0 = arith.constant 0 : index
    %c0_1 = arith.constant 0 : index
    %3 = vector.load %arg2[%c0, %c0_1] : memref<8x32xf32, #tpu.memory_space<vmem>>, vector<8x32xf32>
    %c0_2 = arith.constant 0 : index
    %c0_3 = arith.constant 0 : index
    %4 = vector.load %arg3[%c0_2, %c0_3] : memref<8x32xf32, #tpu.memory_space<vmem>>, vector<8x32xf32>
    %cst = arith.constant dense<0.000000e+00> : vector<8x8xf32>
    %5 = tpu.matmul %3, %4, %cst {dimension_numbers = #tpu.dot_dimension_numbers<[1], [1], [0], [0], [0, 0, 1, 0], [], []>} : vector<8x32xf32>, vector<8x32xf32>, vector<8x8xf32> -> vector<8x8xf32>
    %cst_4 = arith.constant 2.000000e+00 : f32
    %6 = vector.broadcast %cst_4 : f32 to vector<8x8xf32>
    %7 = arith.mulf %5, %6 : vector<8x8xf32>
    %8 = math.exp %7 : vector<8x8xf32>
    %c0_5 = arith.constant 0 : index
    %c0_6 = arith.constant 0 : index
    %9 = vector.load %arg5[%c0_5, %c0_6] : memref<8x1xf32, #tpu.memory_space<vmem>>, vector<8x1xf32>
    %cst_7 = arith.constant dense<0.000000e+00> : vector<8xf32>
    %10 = vector.multi_reduction <add>, %8, %cst_7 [1] : vector<8x8xf32> to vector<8xf32>
    %11 = vector.shape_cast %10 : vector<8xf32> to vector<8x1xf32>
    %12 = arith.addf %9, %11 : vector<8x1xf32>
    %c0_8 = arith.constant 0 : index
    %c0_9 = arith.constant 0 : index
    %13 = vector.load %arg5[%c0_8, %c0_9] : memref<8x1xf32, #tpu.memory_space<vmem>>, vector<8x1xf32>
    tpu.vector_store %arg5[%c0_8, %c0_9], %12 {strides = array<i32>} : memref<8x1xf32, #tpu.memory_space<vmem>>, vector<8x1xf32>,
    %c8_i32 = arith.constant 8 : i32
    %14 = arith.muli %arg0, %c8_i32 : i32
    %c8_i32_10 = arith.constant 8 : i32
    %15 = arith.muli %arg1, %c8_i32_10 : i32
    %c8_i32_11 = arith.constant 8 : i32
    %16 = arith.addi %15, %c8_i32_11 : i32
    %17 = arith.cmpi slt, %14, %16 : i32
    %c8_i32_12 = arith.constant 8 : i32
    %18 = arith.addi %14, %c8_i32_12 : i32
    %19 = arith.cmpi slt, %15, %18 : i32
    %20 = arith.andi %17, %19 : i1
    %21 = arith.extui %20 : i1 to i32
    %c0_i32_13 = arith.constant 0 : i32
    %22 = arith.cmpi ne, %21, %c0_i32_13 : i32
    scf.if %22 {
      %26 = tpu.iota {dimensions = array<i32: 0>} : vector<8x8xi32>
      %27 = vector.broadcast %14 : i32 to vector<8x8xi32>
      %28 = arith.addi %27, %26 : vector<8x8xi32>
      %29 = tpu.iota {dimensions = array<i32: 1>} : vector<8x8xi32>
      %30 = vector.broadcast %15 : i32 to vector<8x8xi32>
      %31 = arith.addi %30, %29 : vector<8x8xi32>
      %c0_15 = arith.constant 0 : index
      %c0_16 = arith.constant 0 : index
      %32 = vector.load %arg5[%c0_15, %c0_16] : memref<8x1xf32, #tpu.memory_space<vmem>>, vector<8x1xf32>
      %33 = arith.cmpi eq, %28, %31 : vector<8x8xi32>
      %cst_17 = arith.constant 0.000000e+00 : f32
      %34 = vector.broadcast %cst_17 : f32 to vector<8x8xf32>
      %35 = arith.select %33, %8, %34 : vector<8x8xi1>, vector<8x8xf32>
      %cst_18 = arith.constant dense<0.000000e+00> : vector<8xf32>
      %36 = vector.multi_reduction <add>, %35, %cst_18 [1] : vector<8x8xf32> to vector<8xf32>
      %37 = vector.shape_cast %36 : vector<8xf32> to vector<8x1xf32>
      %38 = arith.subf %32, %37 : vector<8x1xf32>
      %c0_19 = arith.constant 0 : index
      %c0_20 = arith.constant 0 : index
      %39 = vector.load %arg5[%c0_19, %c0_20] : memref<8x1xf32, #tpu.memory_space<vmem>>, vector<8x1xf32>
      tpu.vector_store %arg5[%c0_19, %c0_20], %38 {strides = array<i32>} : memref<8x1xf32, #tpu.memory_space<vmem>>, vector<8x1xf32>,
    } else {
    }
    %c1_i32 = arith.constant 1 : i32
    %23 = arith.cmpi eq, %arg1, %c1_i32 : i32
    %24 = arith.extui %23 : i1 to i32
    %c0_i32_14 = arith.constant 0 : i32
    %25 = arith.cmpi ne, %24, %c0_i32_14 : i32
    scf.if %25 {
      %c0_15 = arith.constant 0 : index
      %c0_16 = arith.constant 0 : index
      %26 = vector.load %arg5[%c0_15, %c0_16] : memref<8x1xf32, #tpu.memory_space<vmem>>, vector<8x1xf32>
      %c0_17 = arith.constant 0 : index
      %c0_18 = arith.constant 0 : index
      %27 = vector.load %arg4[%c0_17, %c0_18] : memref<8x1xf32, #tpu.memory_space<vmem>>, vector<8x1xf32>
      tpu.vector_store %arg4[%c0_17, %c0_18], %26 {strides = array<i32>} : memref<8x1xf32, #tpu.memory_space<vmem>>, vector<8x1xf32>,
    } else {
    }
    return
  }
  func.func @transform_0(%arg0: i32, %arg1: i32) -> (i32, i32) {
    %c0_i32 = arith.constant 0 : i32
    %c0_i32_0 = arith.constant 0 : i32
    return %arg0, %c0_i32 : i32, i32
  }
  func.func @transform_1(%arg0: i32, %arg1: i32) -> (i32, i32) {
    %c0_i32 = arith.constant 0 : i32
    %c0_i32_0 = arith.constant 0 : i32
    return %arg1, %c0_i32 : i32, i32
  }
  func.func @transform_2(%arg0: i32, %arg1: i32) -> (i32, i32) {
    %c0_i32 = arith.constant 0 : i32
    %c0_i32_0 = arith.constant 0 : i32
    return %arg0, %c0_i32 : i32, i32
  }
}

</mosaic_0001>

<llo_original>
// kernel: tpu_custom_call.1
$region0: #{tpu_custom_call.1}
  #allocation0 [shape = 'u32[]', space=smem, size = 0x4, offset = 0x4, fixed_abs, tag = 'smem constant byte address 0x4 - core index']
  #allocation1 [shape = 'u32[72,128]{1,0:T(1,128)}', space=vmem, size = 0x9000, scoped, tag = 'internal scratch']
  #allocation2 [shape = 'f32[8,1]{1,0:T(8,128)}', space=vmem, size = 0x1000, scoped, tag = 'scratch operand']
  %s0 = inlined_call_operand.hbm [shape: f32[16,32], index: 0, kind: input, shape index: {}]
  %s1 = inlined_call_operand.hbm [shape: f32[16,32], index: 1, kind: input, shape index: {}]
  %s2 = inlined_call_operand.vmem [shape: f32[16,1], index: 2, kind: output, shape index: {}]
  %s3 = sld [smem:[#allocation0]]
  $region61: #{tpu_custom_call.1} parent=0
    _
  %s5 = ssub.s32 1, %s3
  %s6 = scalar_select 0, %s5, %s3
  $region1: #{tpu_custom_call.1} parent=0
    #allocation3 [shape = 'u8[8192]{0}', space=vmem, size = 0x2000, scoped, tag = 'input window, operand 0']
    #allocation4 [shape = 's32[2]{0}', space=sflag, size = 0x8, scoped, tag = 'scoped memory for tpu_custom_call.1']
    #allocation5 [shape = 'u8[8192]{0}', space=vmem, size = 0x2000, scoped, tag = 'input window, operand 1']
    #allocation6 [shape = 's32[2]{0}', space=sflag, size = 0x8, scoped, tag = 'scoped memory for tpu_custom_call.1']
    %7 = vsyncpa [#allocation4], 0
    %s8 = scalar_lea.sflag [#allocation4], 1
    %9 = vsyncpa %s8, 0
    %10 = vsyncpa [#allocation6], 0
    %s11 = scalar_lea.sflag [#allocation6], 1
    %12 = vsyncpa %s11, 0
    loop: start=0, step=1, limit=6
    $region2: #{tpu_custom_call.1} parent=1 // loop_pre_header
      _
    $region3: #{tpu_custom_call.1} parent=1 // loop_header
      %s14 = sphi 0, %s18
      %p15 = scmp.ge.s32.totalorder %s14, 6
      %s21 = sphi 0, %s33
      %s22 = sphi 0, %s29
      %s23 = sphi 0, %s21
      %s24 = sphi 0, %s22
      %s25 = sphi 0, %s23
      %s26 = sphi 0, %s24
      %s36 = sphi 0, %s38
      %s39 = sphi 0, %s36
      %s40 = sphi 0, %s39
      %s56 = sphi 0, %s40
      %s62 = sphi 0, %s64
      %s65 = sphi 0, %s62
      %s66 = sphi 0, %s65
      %s82 = sphi 0, %s66
      %s88 = sphi 0, %s90
      %s91 = sphi 0, %s88
      %s92 = sphi 0, %s91
      %s108 = sphi 0, %s92
    $region4: #{tpu_custom_call.1} parent=1 // loop_header_branch
      %17 = sbr.rel (%p15) target = $region8
    $region5: #{tpu_custom_call.1} parent=1 // loop_body
      %s19 = ssub.s32 %s14, 1
      %s20 = ssub.s32 %s14, 2
      %s27 = sadd.s32 1, %s22
      %p28 = scmp.ge.s32.totalorder %s27, 2
      %s29 = scalar_select %p28, 0, %s27
      %s30 = sadd.s32 1, %s21
      %s31 = scalar_select %p28, %s30, %s21
      %p32 = scmp.ge.s32.totalorder %s31, 2
      %s33 = scalar_select %p32, 0, %s31
      %s34 = ssub.s32 %s21, %s33
      %p35 = scmp.eq.s32.totalorder %s34, 0
      %s37 = sadd.s32 %s36, 1
      %s38 = scalar_select %p35, %s36, %s37
      %p41 = pneg %p35
      %p42 = scmp.eq.s32.totalorder %s14, 3
      %p43 = por %p41, %p42
      %p44 = scmp.ne.s32.totalorder %s36, %s39
      %p45 = scmp.eq.s32.totalorder %s14, 0
      %p46 = por %p44, %p45
      %p47 = scmp.ne.s32.totalorder %s36, %s39
      %p48 = scmp.eq.s32.totalorder %s19, 3
      %p49 = por %p47, %p48
      %p50 = scmp.ne.s32.totalorder %s39, %s40
      %p51 = scmp.eq.s32.totalorder %s19, 0
      %p52 = por %p50, %p51
      %p53 = scmp.ne.s32.totalorder %s39, %s40
      %p54 = scmp.eq.s32.totalorder %s20, 3
      %p55 = por %p53, %p54
      %p57 = scmp.ne.s32.totalorder %s40, %s56
      %p58 = scmp.eq.s32.totalorder %s20, 0
      %p59 = por %p57, %p58
      %s60 = ssub.s32 %s22, %s29
      %p61 = scmp.eq.s32.totalorder %s60, 0
      %s63 = sadd.s32 %s62, 1
      %s64 = scalar_select %p61, %s62, %s63
      %p67 = pneg %p61
      %p68 = scmp.eq.s32.totalorder %s14, 3
      %p69 = por %p67, %p68
      %p70 = scmp.ne.s32.totalorder %s62, %s65
      %p71 = scmp.eq.s32.totalorder %s14, 0
      %p72 = por %p70, %p71
      %p73 = scmp.ne.s32.totalorder %s62, %s65
      %p74 = scmp.eq.s32.totalorder %s19, 3
      %p75 = por %p73, %p74
      %p76 = scmp.ne.s32.totalorder %s65, %s66
      %p77 = scmp.eq.s32.totalorder %s19, 0
      %p78 = por %p76, %p77
      %p79 = scmp.ne.s32.totalorder %s65, %s66
      %p80 = scmp.eq.s32.totalorder %s20, 3
      %p81 = por %p79, %p80
      %p83 = scmp.ne.s32.totalorder %s66, %s82
      %p84 = scmp.eq.s32.totalorder %s20, 0
      %p85 = por %p83, %p84
      %s86 = ssub.s32 %s21, %s33
      %p87 = scmp.eq.s32.totalorder %s86, 0
      %s89 = sadd.s32 %s88, 1
      %s90 = scalar_select %p87, %s88, %s89
      %p93 = pneg %p87
      %p94 = scmp.eq.s32.totalorder %s14, 3
      %p95 = por %p93, %p94
      %p96 = scmp.ne.s32.totalorder %s88, %s91
      %p97 = scmp.eq.s32.totalorder %s14, 0
      %p98 = por %p96, %p97
      %p99 = scmp.ne.s32.totalorder %s88, %s91
      %p100 = scmp.eq.s32.totalorder %s19, 3
      %p101 = por %p99, %p100
      %p102 = scmp.ne.s32.totalorder %s91, %s92
      %p103 = scmp.eq.s32.totalorder %s19, 0
      %p104 = por %p102, %p103
      %p105 = scmp.ne.s32.totalorder %s91, %s92
      %p106 = scmp.eq.s32.totalorder %s20, 3
      %p107 = por %p105, %p106
      %p109 = scmp.ne.s32.totalorder %s92, %s108
      %p110 = scmp.eq.s32.totalorder %s20, 0
      %p111 = por %p109, %p110
      %p112 = scmp.le.s32.totalorder 1, %s14
      %p113 = scmp.lt.s32.totalorder %s14, 5
      %p114 = pnand %p112, %p113
      %p115 = pneg %p114
      // Predicated region
      $region9: #{tpu_custom_call.1} parent=5 // pred_check
        _
      $region10: #{tpu_custom_call.1} parent=5 // pred_check_branch
        %117 = sbr.rel (%p114) target = $region12
      $region11: #{tpu_custom_call.1} parent=5 // pred_region
        %s118 = ssub.s32 %s14, 1
      $region12: #{tpu_custom_call.1} parent=5 // pred_fallthru
        _
      %p119 = scmp.lt.s32.totalorder %s14, 4
      // Predicated region
      $region13: #{tpu_custom_call.1} parent=5 // pred_check
        %p120 = pneg %p119
      $region14: #{tpu_custom_call.1} parent=5 // pred_check_branch
        %122 = sbr.rel (%p120) target = $region16
      $region15: #{tpu_custom_call.1} parent=5 // pred_region
        // Predicated region
        $region17: #{tpu_custom_call.1} parent=15 // pred_check
          %p123 = pneg %p46
        $region18: #{tpu_custom_call.1} parent=15 // pred_check_branch
          %125 = sbr.rel (%p123) target = $region20
        $region19: #{tpu_custom_call.1} parent=15 // pred_region
          %s126 = sand.u32 %s36, 1
          %s127 = scalar_lea.sflag [#allocation4], %s126
          %s128 = sand.u32 %s36, 1
          %s129 = smul.addr %s128, 8
          %s130 = scalar_lea.vmem [#allocation3], %s129
          %132 = vsyncadd %s127, 0
          %s133 = smul.addr %s21, 8
          %s134 = scalar_lea.hbm %s0, %s133
          %s136 = sshll.u32 %s134, 4
          %s137 = int_to_ptr.hbm [resolvable:$true] %s136
          %s138 = sshll.u32 %s130, 4
          %s139 = int_to_ptr.vmem [resolvable:$true] %s138
          %141 = dma.hbm_to_vmem [thread:$0]  %s137, 128, %s139, %s127
        $region20: #{tpu_custom_call.1} parent=15 // pred_fallthru
          _
        // Predicated region
        $region21: #{tpu_custom_call.1} parent=15 // pred_check
          %p142 = pneg %p72
        $region22: #{tpu_custom_call.1} parent=15 // pred_check_branch
          %144 = sbr.rel (%p142) target = $region24
        $region23: #{tpu_custom_call.1} parent=15 // pred_region
          %s145 = sand.u32 %s62, 1
          %s146 = scalar_lea.sflag [#allocation6], %s145
          %s147 = sand.u32 %s62, 1
          %s148 = smul.addr %s147, 8
          %s149 = scalar_lea.vmem [#allocation5], %s148
          %151 = vsyncadd %s146, 0
          %s152 = smul.addr %s22, 8
          %s153 = scalar_lea.hbm %s1, %s152
          %s155 = sshll.u32 %s153, 4
          %s156 = int_to_ptr.hbm [resolvable:$true] %s155
          %s157 = sshll.u32 %s149, 4
          %s158 = int_to_ptr.vmem [resolvable:$true] %s157
          %160 = dma.hbm_to_vmem [thread:$0]  %s156, 128, %s158, %s146
        $region24: #{tpu_custom_call.1} parent=15 // pred_fallthru
          _
      $region16: #{tpu_custom_call.1} parent=5 // pred_fallthru
        _
      %p161 = scmp.le.s32.totalorder 1, %s14
      %p162 = scmp.lt.s32.totalorder %s14, 5
      %p163 = pnand %p161, %p162
      %p164 = pneg %p163
      // Predicated region
      $region25: #{tpu_custom_call.1} parent=5 // pred_check
        _
      $region26: #{tpu_custom_call.1} parent=5 // pred_check_branch
        %166 = sbr.rel (%p163) target = $region28
      $region27: #{tpu_custom_call.1} parent=5 // pred_region
        %s167 = ssub.s32 %s14, 1
        %s168 = sand.u32 %s39, 1
        %s169 = scalar_lea.sflag [#allocation4], %s168
        %s170 = sand.u32 %s39, 1
        %s171 = smul.addr %s170, 8
        %s172 = scalar_lea.vmem [#allocation3], %s171
        // Predicated region
        $region29: #{tpu_custom_call.1} parent=27 // pred_check
          %p173 = pneg %p52
        $region30: #{tpu_custom_call.1} parent=27 // pred_check_branch
          %175 = sbr.rel (%p173) target = $region32
        $region31: #{tpu_custom_call.1} parent=27 // pred_region
          %177 = dma.done %s169, 128
        $region32: #{tpu_custom_call.1} parent=27 // pred_fallthru
          _
        %s178 = sand.u32 %s65, 1
        %s179 = scalar_lea.sflag [#allocation6], %s178
        %s180 = sand.u32 %s65, 1
        %s181 = smul.addr %s180, 8
        %s182 = scalar_lea.vmem [#allocation5], %s181
        // Predicated region
        $region33: #{tpu_custom_call.1} parent=27 // pred_check
          %p183 = pneg %p78
        $region34: #{tpu_custom_call.1} parent=27 // pred_check_branch
          %185 = sbr.rel (%p183) target = $region36
        $region35: #{tpu_custom_call.1} parent=27 // pred_region
          %187 = dma.done %s179, 128
        $region36: #{tpu_custom_call.1} parent=27 // pred_fallthru
          _
        %s188 = sand.u32 %s39, 1
        %s189 = scalar_lea.sflag [#allocation4], %s188
        %s190 = sand.u32 %s39, 1
        %s191 = smul.addr %s190, 8
        %s192 = scalar_lea.vmem [#allocation3], %s191
        %p193 = pneg %p52
        %p194 = pneg %p49
        %s195 = sand.u32 %s65, 1
        %s196 = scalar_lea.sflag [#allocation6], %s195
        %s197 = sand.u32 %s65, 1
        %s198 = smul.addr %s197, 8
        %s199 = scalar_lea.vmem [#allocation5], %s198
        %p200 = pneg %p78
        %p201 = pneg %p75
        %p202 = pneg %p104
        %p203 = pneg %p101
        %p204 = scmp.lt.s32.totalorder %s23, 1
        %s205 = scalar_select %p204, %s23, 1
        %s206 = smul.addr %s205, 8
        %s207 = scalar_lea.vmem %s2, %s206
        %p208 = scmp.lt.s32.totalorder %s23, 1
        %s209 = scalar_select %p208, %s23, 1
        %s210 = smul.addr %s209, 8
        %s211 = scalar_lea.vmem %s2, %s210
        %p212 = scmp.eq.s32.totalorder %s24, 0
        // Predicated region
        $region37: #{tpu_custom_call.1} parent=27 // pred_check
          %p213 = pneg %p212
        $region38: #{tpu_custom_call.1} parent=27 // pred_check_branch
          %215 = sbr.rel (%p213) target = $region40
        $region39: #{tpu_custom_call.1} parent=27 // pred_region
          %vm216 = vcmask 7168
          %217 = vst.msk [vmem:[#allocation2] sm:$0xff] %vm216, 0.0
        $region40: #{tpu_custom_call.1} parent=27 // pred_fallthru
          _
        %v218 = vld [vmem:[%s172] sm:$0xff]
        %v219 = vld [vmem:[%s182] sm:$0xff]
        %vm220 = vcmask 261120
        %v222 = vsel %vm220, %v218, 0
        %v225 = vsel %vm220, %v219, 0
        %227 = vmatpush.xpose.msra.mxu0 0.0
        %228 = vmatpush.xpose.msra.mxu0 0.0
        %229 = vmatpush.xpose.msra.mxu0 0.0
        %230 = vmatpush.xpose.msra.mxu0 0.0
        %231 = vmatpush.xpose.msra.mxu0 0.0
        %232 = vmatpush.xpose.msra.mxu0 0.0
        %233 = vmatpush.xpose.msra.mxu0 0.0
        %234 = vmatpush.xpose.msra.mxu0 0.0
        %235 = vmatpush.xpose.msra.mxu0 0.0
        %236 = vmatpush.xpose.msra.mxu0 0.0
        %237 = vmatpush.xpose.msra.mxu0 0.0
        %238 = vmatpush.xpose.msra.mxu0 0.0
        %239 = vmatpush.xpose.msra.mxu0 0.0
        %240 = vmatpush.xpose.msra.mxu0 0.0
        %241 = vmatpush.xpose.msra.mxu0 0.0
        %242 = vmatpush.xpose.msra.mxu0 %v225
        %243 = vmatmul.f32.gmra.mxu0 %v222
        %v244 = vpop.f32.mrf.mxu0
        %v245 = vadd.f32 0.0, %v244
        %246 = vdwg.mxu0
        %v247 = vmul.f32 %v245, 2.0
        %v248 = vmul.f32 %v247, 1.442695
        %v249 = vpow.pop %v248
        %v250 = vld [vmem:[#allocation2] sm:$0xff]
        %vm251 = vcmask 64512
        %v252 = vsel %vm251, %v249, 0.0
        %253 = vadd.xlane.f32.xlu0 %v252
        %v254 = vpop.xlane.xlu0 %253
        %v255 = vadd.f32 %v250, %v254
        %vm256 = vcmask 7168
        %257 = vst.msk [vmem:[#allocation2] sm:$0xff] %vm256, %v255
        %s258 = smul.u32 %s23, 8
        %s259 = smul.u32 %s24, 8
        %s260 = sadd.s32 %s259, 8
        %p261 = scmp.lt.s32.totalorder %s258, %s260
        %s262 = sadd.s32 %s258, 8
        %p263 = scmp.lt.s32.totalorder %s259, %s262
        %p264 = pnand %p261, %p263
        %p265 = pneg %p264
        // Predicated region
        $region41: #{tpu_custom_call.1} parent=27 // pred_check
          _
        $region42: #{tpu_custom_call.1} parent=27 // pred_check_branch
          %267 = sbr.rel (%p264) target = $region44
        $region43: #{tpu_custom_call.1} parent=27 // pred_region
          %v268 = vlaneseq
          %v269 = vshrl.u32 %v268, 7
          %v270 = vstv %s258
          %v271 = vadd.s32 %v270, %v269
          %v272 = vlaneseq
          %v273 = vand.u32 %v272, 127
          %v274 = vstv %s259
          %v275 = vadd.s32 %v274, %v273
          %v276 = vld [vmem:[#allocation2] sm:$0xff]
          %vm277 = vcmp.eq.s32.totalorder %v271, %v275
          %v278 = vsel %vm277, %v249, 0.0
          %v279 = vsel %vm251, %v278, 0.0
          %280 = vadd.xlane.f32.xlu0 %v279
          %v281 = vpop.xlane.xlu0 %280
          %v282 = vsub.f32 %v276, %v281
          %283 = vst.msk [vmem:[#allocation2] sm:$0xff] %vm256, %v282
        $region44: #{tpu_custom_call.1} parent=27 // pred_fallthru
          _
        %p284 = scmp.eq.s32.totalorder %s24, 1
        // Predicated region
        $region45: #{tpu_custom_call.1} parent=27 // pred_check
          %p285 = pneg %p284
        $region46: #{tpu_custom_call.1} parent=27 // pred_check_branch
          %287 = sbr.rel (%p285) target = $region48
        $region47: #{tpu_custom_call.1} parent=27 // pred_region
          %v288 = vld [vmem:[#allocation2] sm:$0xff]
          %289 = vst.msk [vmem:[%s211] sm:$0xff] %vm256, %v288
        $region48: #{tpu_custom_call.1} parent=27 // pred_fallthru
          _
        %p290 = scmp.lt.s32.totalorder %s23, 1
        %s291 = scalar_select %p290, %s23, 1
        %s292 = smul.addr %s291, 8
        %s293 = scalar_lea.vmem %s2, %s292
        // Predicated region
        $region49: #{tpu_custom_call.1} parent=27 // pred_check
          %p294 = pneg %p101
        $region50: #{tpu_custom_call.1} parent=27 // pred_check_branch
          %296 = sbr.rel (%p294) target = $region52
        $region51: #{tpu_custom_call.1} parent=27 // pred_region
          _
        $region52: #{tpu_custom_call.1} parent=27 // pred_fallthru
          _
      $region28: #{tpu_custom_call.1} parent=5 // pred_fallthru
        _
      %p297 = scmp.le.s32.totalorder 2, %s14
      // Predicated region
      $region53: #{tpu_custom_call.1} parent=5 // pred_check
        %p298 = pneg %p297
      $region54: #{tpu_custom_call.1} parent=5 // pred_check_branch
        %300 = sbr.rel (%p298) target = $region56
      $region55: #{tpu_custom_call.1} parent=5 // pred_region
        %s301 = ssub.s32 %s14, 2
        // Predicated region
        $region57: #{tpu_custom_call.1} parent=55 // pred_check
          %p302 = pneg %p107
        $region58: #{tpu_custom_call.1} parent=55 // pred_check_branch
          %304 = sbr.rel (%p302) target = $region60
        $region59: #{tpu_custom_call.1} parent=55 // pred_region
          %p305 = scmp.lt.s32.totalorder %s25, 1
          %s306 = scalar_select %p305, %s25, 1
          %s307 = smul.addr %s306, 8
          %s308 = scalar_lea.vmem %s2, %s307
        $region60: #{tpu_custom_call.1} parent=55 // pred_fallthru
          _
      $region56: #{tpu_custom_call.1} parent=5 // pred_fallthru
        _
    $region6: #{tpu_custom_call.1} parent=1 // loop_footer
      %s18 = sadd.s32 1, %s14
    $region7: #{tpu_custom_call.1} parent=1 // loop_footer_branch
      %13 = sbr.rel target = $region3
    $region8: #{tpu_custom_call.1} parent=1 // loop_exit
      _
    %309 = vsyncpa [#allocation4], 1
    %s310 = scalar_lea.sflag [#allocation4], 1
    %311 = vsyncpa %s310, 1
    %312 = vsyncpa [#allocation6], 1
    %s313 = scalar_lea.sflag [#allocation6], 1
    %314 = vsyncpa %s313, 1

</llo_original>
